<compile_context>
chip_gen: v7x
topology: tpu7x:2x2x1
jax: 0.10.0
libtpu: 0.0.40
codegen_flags: <defaults>
</compile_context>

<pallas_src>
import functools

import numpy as np
import jax
import jax.numpy as jnp
from jax.experimental import pallas as pl
from jax.experimental.pallas import tpu as pltpu


def _round_up(x, m):
    return ((x + m - 1) // m) * m


def _pick_tiles(n):
    """Row/col tile sizes for the fused attention kernel.

    Bigger tiles amortize the ~0.35us/step grid overhead and push the DMAs
    toward the HBM roofline, but we keep >= 2 row tiles for small graphs so
    the "parallel" grid axis can still shard across both v7x TensorCores.
    """
    if n >= 2048:
        return 256, 512
    if n >= 1024:
        return 256, 256
    if n >= 512:
        return 128, 256
    return 128, 128


# --------------------------------------------------------------------------
# Kernel A: h = x @ W (bf16 out); f_src = h.a1 ; f_dst = h.a2   (row-tiled)
# --------------------------------------------------------------------------
def _proj_kernel(x_ref, w_ref, a1_ref, a2_ref, h_ref, fs_ref, fd_ref):
    h = jnp.dot(x_ref[...], w_ref[...], preferred_element_type=jnp.float32)
    h_ref[...] = h.astype(h_ref.dtype)                      # bf16 for the spmm
    # VPU multiply + lane reduce instead of two N=1 MXU matmuls.
    fs_ref[...] = jnp.sum(h * a1_ref[...], axis=-1, keepdims=True)
    fd_ref[...] = jnp.sum(h * a2_ref[...], axis=-1, keepdims=True)


# --------------------------------------------------------------------------
# Kernel B: fused masked-attention aggregation over column tiles
# --------------------------------------------------------------------------
def _attn_kernel(adj_ref, h_ref, fs_ref, fd_ref, out_ref, acc_ref, rsum_ref,
                 *, alpha, concat):
    k = pl.program_id(1)

    @pl.when(k == 0)
    def _():
        acc_ref[...] = jnp.zeros_like(acc_ref)
        rsum_ref[...] = jnp.zeros_like(rsum_ref)

    # scores[i, j] = f_src[i] + f_dst[j]   -> (TM, TK); all elementwise in f32
    scores = fs_ref[...] + fd_ref[...]
    lrelu = jnp.where(scores > 0, scores, alpha * scores)        # LeakyReLU
    mask = adj_ref[...] != 0                                     # int8 stream
    e = jnp.where(mask, jnp.exp(-lrelu), 0.0)                    # edge_e, dense

    rsum_ref[...] += jnp.sum(e, axis=-1, keepdims=True)          # e_rowsum
    # spmm(e, h): bf16 MXU operands, f32 accumulation.
    acc_ref[...] += jnp.dot(e.astype(jnp.bfloat16), h_ref[...],
                            preferred_element_type=jnp.float32)

    @pl.when(k == pl.num_programs(1) - 1)
    def _():
        rsum = rsum_ref[...]
        rsum = jnp.where(rsum > 0.0, rsum, 1.0)   # guard padded/edge-free rows
        hp = acc_ref[...] * pl.reciprocal(rsum, approx=True)
        if concat:
            hp = jnp.where(hp > 0, hp, jnp.expm1(hp))            # ELU
        out_ref[...] = hp.astype(out_ref.dtype)


# --------------------------------------------------------------------------
# Wrapper
# --------------------------------------------------------------------------
def sp_gat_forward(x, adj, params, *, alpha=0.2, concat=True, tm=None, tk=None):
    N, F_in = x.shape
    W = params["W"].astype(jnp.float32)          # (F_in, F_out)
    a = params["a"].astype(jnp.float32)          # (1, 2*F_out)
    F_out = W.shape[1]
    a1 = a[:, :F_out]                            # (1, F_out)
    a2 = a[:, F_out:]                            # (1, F_out)

    if tm is None or tk is None:
        tm_d, tk_d = _pick_tiles(N)
        tm = tm or tm_d
        tk = tk or tk_d

    # tm/tk are power-of-two multiples of 128 -> lcm == max.
    Np = _round_up(N, max(tm, tk))

    x_f = x.astype(jnp.float32)
    if Np != N:
        x_f = jnp.pad(x_f, ((0, Np - N), (0, 0)))

    # int8 adjacency: the dominant HBM stream in Kernel B shrinks 4x vs f32.
    # (Callers should keep adj in int8/bool so this cast is free.)
    if adj.dtype in (jnp.int8, jnp.bool_):
        adj_i8 = adj.astype(jnp.int8)
    else:
        adj_i8 = (adj != 0).astype(jnp.int8)
    if Np != N:
        adj_i8 = jnp.pad(adj_i8, ((0, Np - N), (0, Np - N)))

    # ---- Kernel A: projections ------------------------------------------
    h, f_src, f_dst = pl.pallas_call(
        _proj_kernel,
        out_shape=(jax.ShapeDtypeStruct((Np, F_out), jnp.bfloat16),
                   jax.ShapeDtypeStruct((Np, 1), jnp.float32),
                   jax.ShapeDtypeStruct((Np, 1), jnp.float32)),
        grid_spec=pltpu.PrefetchScalarGridSpec(
            num_scalar_prefetch=0,
            grid=(Np // tm,),
            in_specs=[pl.BlockSpec((tm, F_in), lambda i: (i, 0)),
                      pl.BlockSpec((F_in, F_out), lambda i: (0, 0)),
                      pl.BlockSpec((1, F_out), lambda i: (0, 0)),
                      pl.BlockSpec((1, F_out), lambda i: (0, 0))],
            out_specs=[pl.BlockSpec((tm, F_out), lambda i: (i, 0)),
                       pl.BlockSpec((tm, 1), lambda i: (i, 0)),
                       pl.BlockSpec((tm, 1), lambda i: (i, 0))],
        ),
        compiler_params=pltpu.CompilerParams(
            dimension_semantics=("parallel",)),
    )(x_f, W, a1, a2)

    f_dst_row = f_dst.T                          # (1, Np), tiny, lane broadcast

    # ---- Kernel B: fused masked attention + aggregation -----------------
    out = pl.pallas_call(
        functools.partial(_attn_kernel, alpha=float(alpha), concat=bool(concat)),
        out_shape=jax.ShapeDtypeStruct((Np, F_out), jnp.float32),
        grid_spec=pltpu.PrefetchScalarGridSpec(
            num_scalar_prefetch=0,
            grid=(Np // tm, Np // tk),
            in_specs=[pl.BlockSpec((tm, tk), lambda i, k: (i, k)),       # adj i8
                      pl.BlockSpec((tk, F_out), lambda i, k: (k, 0)),    # h bf16
                      pl.BlockSpec((tm, 1), lambda i, k: (i, 0)),        # f_src
                      pl.BlockSpec((1, tk), lambda i, k: (0, k))],       # f_dst
            out_specs=pl.BlockSpec((tm, F_out), lambda i, k: (i, 0)),
            scratch_shapes=[pltpu.VMEM((tm, F_out), jnp.float32),
                            pltpu.VMEM((tm, 1), jnp.float32)],
        ),
        compiler_params=pltpu.CompilerParams(
            dimension_semantics=("parallel", "arbitrary"),
            vmem_limit_bytes=32 * 1024 * 1024),
    )(adj_i8, h, f_src, f_dst_row)

    return out[:N]


# --------------------------------------------------------------------------
# Pure-JAX reference mirroring the PyTorch forward (dense equivalent, f32)
# --------------------------------------------------------------------------
def _reference(x, adj, params, *, alpha=0.2, concat=True):
    W = params["W"]
    a = params["a"]
    F_out = W.shape[1]
    h = x @ W
    f1 = h @ a[:, :F_out].T                      # (N, 1)
    f2 = h @ a[:, F_out:].T                      # (N, 1)
    scores = f1 + f2.T
    lrelu = jnp.where(scores > 0, scores, alpha * scores)
    e = jnp.where(adj != 0, jnp.exp(-lrelu), 0.0)
    rowsum = e.sum(axis=1, keepdims=True)
    hp = (e @ h) / rowsum
    if concat:
        hp = jnp.where(hp > 0, hp, jnp.expm1(hp))
    return hp


if __name__ == "__main__":
    N, F_IN, F_OUT = 256, 32, 64
    ALPHA = 0.2

    key = jax.random.PRNGKey(0)
    kx, kadj, kw, ka = jax.random.split(key, 4)

    gain = 1.414  # xavier_normal_ gain used by the module
    W = gain * jnp.sqrt(2.0 / (F_IN + F_OUT)) * jax.random.normal(
        kw, (F_IN, F_OUT), jnp.float32)
    a = gain * jnp.sqrt(2.0 / (1 + 2 * F_OUT)) * jax.random.normal(
        ka, (1, 2 * F_OUT), jnp.float32)
    params = {"W": W, "a": a}

    x = jax.random.normal(kx, (N, F_IN), dtype=jnp.float32)
    # Adjacency kept in int8 end-to-end (self-loops -> no empty rows).
    adj = (jax.random.uniform(kadj, (N, N)) < 0.25)
    adj = jnp.logical_or(adj, jnp.eye(N, dtype=jnp.bool_)).astype(jnp.int8)

    out = sp_gat_forward(x, adj, params, alpha=ALPHA, concat=True)
    out = jax.block_until_ready(out)

    ref = _reference(x, adj, params, alpha=ALPHA, concat=True)
    assert out.shape == ref.shape, (out.shape, ref.shape)
    # Tolerance relaxed vs. a pure-f32 kernel: the e@h spmm uses bf16 MXU
    # operands and the finalize uses the approximate EUP reciprocal.
    np.testing.assert_allclose(np.asarray(out), np.asarray(ref),
                               rtol=2e-2, atol=2e-2)
    print("KERNEL_OK")
</pallas_src>

<mosaic_0001>
module attributes {stable_mosaic.version = 11 : i64} {
  func.func @_proj_kernel(%arg0: i32, %arg1: memref<128x32xf32, #tpu.memory_space<vmem>>, %arg2: memref<32x64xf32, #tpu.memory_space<vmem>>, %arg3: memref<1x64xf32, #tpu.memory_space<vmem>>, %arg4: memref<1x64xf32, #tpu.memory_space<vmem>>, %arg5: memref<128x64xbf16, #tpu.memory_space<vmem>>, %arg6: memref<128x1xf32, #tpu.memory_space<vmem>>, %arg7: memref<128x1xf32, #tpu.memory_space<vmem>>) attributes {dimension_semantics = [#tpu.dimension_semantics<parallel>], iteration_bounds = array<i64: 2>, scalar_prefetch = 0 : i64, scratch_operands = 0 : i64, tpu.core_type = #tpu.core_type<tc>, window_params = [{transform_indices = @transform_0, window_bounds = array<i64: 128, 32>}, {pipeline_mode = #tpu.pipeline_mode<synchronous>, transform_indices = @transform_1, window_bounds = array<i64: 32, 64>}, {pipeline_mode = #tpu.pipeline_mode<synchronous>, transform_indices = @transform_2, window_bounds = array<i64: 1, 64>}, {pipeline_mode = #tpu.pipeline_mode<synchronous>, transform_indices = @transform_3, window_bounds = array<i64: 1, 64>}, {transform_indices = @transform_4, window_bounds = array<i64: 128, 64>}, {transform_indices = @transform_5, window_bounds = array<i64: 128, 1>}, {transform_indices = @transform_6, window_bounds = array<i64: 128, 1>}]} {
    %c0 = arith.constant 0 : index
    %c0_0 = arith.constant 0 : index
    %0 = vector.load %arg1[%c0, %c0_0] : memref<128x32xf32, #tpu.memory_space<vmem>>, vector<128x32xf32>
    %c0_1 = arith.constant 0 : index
    %c0_2 = arith.constant 0 : index
    %1 = vector.load %arg2[%c0_1, %c0_2] : memref<32x64xf32, #tpu.memory_space<vmem>>, vector<32x64xf32>
    %cst = arith.constant dense<0.000000e+00> : vector<128x64xf32>
    %2 = tpu.matmul %0, %1, %cst {dimension_numbers = #tpu.dot_dimension_numbers<[1], [0], [0], [1], [0, 0, 1, 1], [], []>} : vector<128x32xf32>, vector<32x64xf32>, vector<128x64xf32> -> vector<128x64xf32>
    %3 = arith.truncf %2 : vector<128x64xf32> to vector<128x64xbf16>
    %c0_3 = arith.constant 0 : index
    %c0_4 = arith.constant 0 : index
    %4 = vector.load %arg5[%c0_3, %c0_4] : memref<128x64xbf16, #tpu.memory_space<vmem>>, vector<128x64xbf16>
    tpu.vector_store %arg5[%c0_3, %c0_4], %3 {strides = array<i32>} : memref<128x64xbf16, #tpu.memory_space<vmem>>, vector<128x64xbf16>,
    %c0_5 = arith.constant 0 : index
    %c0_6 = arith.constant 0 : index
    %5 = vector.load %arg3[%c0_5, %c0_6] : memref<1x64xf32, #tpu.memory_space<vmem>>, vector<1x64xf32>
    %6 = vector.broadcast %5 : vector<1x64xf32> to vector<128x64xf32>
    %7 = arith.mulf %2, %6 : vector<128x64xf32>
    %cst_7 = arith.constant dense<0.000000e+00> : vector<128xf32>
    %8 = vector.multi_reduction <add>, %7, %cst_7 [1] : vector<128x64xf32> to vector<128xf32>
    %9 = vector.shape_cast %8 : vector<128xf32> to vector<128x1xf32>
    %c0_8 = arith.constant 0 : index
    %c0_9 = arith.constant 0 : index
    %10 = vector.load %arg6[%c0_8, %c0_9] : memref<128x1xf32, #tpu.memory_space<vmem>>, vector<128x1xf32>
    tpu.vector_store %arg6[%c0_8, %c0_9], %9 {strides = array<i32>} : memref<128x1xf32, #tpu.memory_space<vmem>>, vector<128x1xf32>,
    %c0_10 = arith.constant 0 : index
    %c0_11 = arith.constant 0 : index
    %11 = vector.load %arg4[%c0_10, %c0_11] : memref<1x64xf32, #tpu.memory_space<vmem>>, vector<1x64xf32>
    %12 = vector.broadcast %11 : vector<1x64xf32> to vector<128x64xf32>
    %13 = arith.mulf %2, %12 : vector<128x64xf32>
    %cst_12 = arith.constant dense<0.000000e+00> : vector<128xf32>
    %14 = vector.multi_reduction <add>, %13, %cst_12 [1] : vector<128x64xf32> to vector<128xf32>
    %15 = vector.shape_cast %14 : vector<128xf32> to vector<128x1xf32>
    %c0_13 = arith.constant 0 : index
    %c0_14 = arith.constant 0 : index
    %16 = vector.load %arg7[%c0_13, %c0_14] : memref<128x1xf32, #tpu.memory_space<vmem>>, vector<128x1xf32>
    tpu.vector_store %arg7[%c0_13, %c0_14], %15 {strides = array<i32>} : memref<128x1xf32, #tpu.memory_space<vmem>>, vector<128x1xf32>,
    return
  }
  func.func @transform_0(%arg0: i32) -> (i32, i32) {
    %c0_i32 = arith.constant 0 : i32
    %c0_i32_0 = arith.constant 0 : i32
    return %arg0, %c0_i32 : i32, i32
  }
  func.func @transform_1(%arg0: i32) -> (i32, i32) {
    %c0_i32 = arith.constant 0 : i32
    %c0_i32_0 = arith.constant 0 : i32
    %c0_i32_1 = arith.constant 0 : i32
    return %c0_i32, %c0_i32_0 : i32, i32
  }
  func.func @transform_2(%arg0: i32) -> (i32, i32) {
    %c0_i32 = arith.constant 0 : i32
    %c0_i32_0 = arith.constant 0 : i32
    %c0_i32_1 = arith.constant 0 : i32
    return %c0_i32, %c0_i32_0 : i32, i32
  }
  func.func @transform_3(%arg0: i32) -> (i32, i32) {
    %c0_i32 = arith.constant 0 : i32
    %c0_i32_0 = arith.constant 0 : i32
    %c0_i32_1 = arith.constant 0 : i32
    return %c0_i32, %c0_i32_0 : i32, i32
  }
  func.func @transform_4(%arg0: i32) -> (i32, i32) {
    %c0_i32 = arith.constant 0 : i32
    %c0_i32_0 = arith.constant 0 : i32
    return %arg0, %c0_i32 : i32, i32
  }
  func.func @transform_5(%arg0: i32) -> (i32, i32) {
    %c0_i32 = arith.constant 0 : i32
    %c0_i32_0 = arith.constant 0 : i32
    return %arg0, %c0_i32 : i32, i32
  }
  func.func @transform_6(%arg0: i32) -> (i32, i32) {
    %c0_i32 = arith.constant 0 : i32
    %c0_i32_0 = arith.constant 0 : i32
    return %arg0, %c0_i32 : i32, i32
  }
}

</mosaic_0001>

<llo_original>
// kernel: tpu_custom_call.1
$region0: #{tpu_custom_call.1}
  #allocation0 [shape = 'u32[]', space=smem, size = 0x4, offset = 0x4, fixed_abs, tag = 'smem constant byte address 0x4 - core index']
  #allocation1 [shape = 'u32[144,128]{1,0:T(1,128)}', space=vmem, size = 0x12000, scoped, tag = 'internal scratch']
  %s0 = inlined_call_operand.vmem [shape: f32[256,32], index: 0, kind: input, shape index: {}]
  %s1 = inlined_call_operand.vmem [shape: f32[32,64], index: 1, kind: input, shape index: {}]
  %s2 = inlined_call_operand.vmem [shape: f32[1,64], index: 2, kind: input, shape index: {}]
  %s3 = inlined_call_operand.vmem [shape: f32[1,64], index: 3, kind: input, shape index: {}]
  %s4 = inlined_call_operand.vmem [shape: bf16[256,64], index: 4, kind: output, shape index: {0}]
  %s5 = inlined_call_operand.vmem [shape: f32[256,1], index: 5, kind: output, shape index: {1}]
  %s6 = inlined_call_operand.vmem [shape: f32[256,1], index: 6, kind: output, shape index: {2}]
  %7 = xla_tuple %s4, %s5, %s6
  %s8 = sld [smem:[#allocation0]]
  $region65: #{tpu_custom_call.1} parent=0
    _
  %s10 = ssub.s32 1, %s8
  %s11 = scalar_select 0, %s10, %s8
  loop: start=0, step=1, limit=4
  $region2: #{tpu_custom_call.1} parent=0 // loop_pre_header
    _
  $region3: #{tpu_custom_call.1} parent=0 // loop_header
    %s13 = sphi 0, %s17
    %p14 = scmp.ge.s32.totalorder %s13, 4
    %s23 = sphi 0, %s25
    %s26 = sphi 0, %s23
    %s27 = sphi 0, %s26
    %s43 = sphi 0, %s27
    %s47 = sphi 0, %s47
    %s49 = sphi 0, %s47
    %s50 = sphi 0, %s49
    %s64 = sphi 0, %s50
    %s68 = sphi 0, %s68
    %s70 = sphi 0, %s68
    %s71 = sphi 0, %s70
    %s85 = sphi 0, %s71
    %s89 = sphi 0, %s89
    %s91 = sphi 0, %s89
    %s92 = sphi 0, %s91
    %s106 = sphi 0, %s92
    %s112 = sphi 0, %s114
    %s115 = sphi 0, %s112
    %s116 = sphi 0, %s115
    %s132 = sphi 0, %s116
    %s138 = sphi 0, %s140
    %s141 = sphi 0, %s138
    %s142 = sphi 0, %s141
    %s158 = sphi 0, %s142
    %s164 = sphi 0, %s166
    %s167 = sphi 0, %s164
    %s168 = sphi 0, %s167
    %s184 = sphi 0, %s168
  $region4: #{tpu_custom_call.1} parent=0 // loop_header_branch
    %16 = sbr.rel (%p14) target = $region8
  $region5: #{tpu_custom_call.1} parent=0 // loop_body
    %s18 = ssub.s32 %s13, 1
    %s19 = ssub.s32 %s13, 2
    %s20 = sadd.s32 %s13, 1
    %s21 = ssub.s32 %s13, %s20
    %p22 = scmp.eq.s32.totalorder %s21, 0
    %s24 = sadd.s32 %s23, 1
    %s25 = scalar_select %p22, %s23, %s24
    %p28 = pneg %p22
    %p29 = scmp.eq.s32.totalorder %s13, 1
    %p30 = por %p28, %p29
    %p31 = scmp.ne.s32.totalorder %s23, %s26
    %p32 = scmp.eq.s32.totalorder %s13, 0
    %p33 = por %p31, %p32
    %p34 = scmp.ne.s32.totalorder %s23, %s26
    %p35 = scmp.eq.s32.totalorder %s18, 1
    %p36 = por %p34, %p35
    %p37 = scmp.ne.s32.totalorder %s26, %s27
    %p38 = scmp.eq.s32.totalorder %s18, 0
    %p39 = por %p37, %p38
    %p40 = scmp.ne.s32.totalorder %s26, %s27
    %p41 = scmp.eq.s32.totalorder %s19, 1
    %p42 = por %p40, %p41
    %p44 = scmp.ne.s32.totalorder %s27, %s43
    %p45 = scmp.eq.s32.totalorder %s19, 0
    %p46 = por %p44, %p45
    %s48 = sadd.s32 %s47, 1
    %p51 = scmp.eq.s32.totalorder %s13, 1
    %p52 = scmp.ne.s32.totalorder %s47, %s49
    %p53 = scmp.eq.s32.totalorder %s13, 0
    %p54 = por %p52, %p53
    %p55 = scmp.ne.s32.totalorder %s47, %s49
    %p56 = scmp.eq.s32.totalorder %s18, 1
    %p57 = por %p55, %p56
    %p58 = scmp.ne.s32.totalorder %s49, %s50
    %p59 = scmp.eq.s32.totalorder %s18, 0
    %p60 = por %p58, %p59
    %p61 = scmp.ne.s32.totalorder %s49, %s50
    %p62 = scmp.eq.s32.totalorder %s19, 1
    %p63 = por %p61, %p62
    %p65 = scmp.ne.s32.totalorder %s50, %s64
    %p66 = scmp.eq.s32.totalorder %s19, 0
    %p67 = por %p65, %p66
    %s69 = sadd.s32 %s68, 1
    %p72 = scmp.eq.s32.totalorder %s13, 1
    %p73 = scmp.ne.s32.totalorder %s68, %s70
    %p74 = scmp.eq.s32.totalorder %s13, 0
    %p75 = por %p73, %p74
    %p76 = scmp.ne.s32.totalorder %s68, %s70
    %p77 = scmp.eq.s32.totalorder %s18, 1
    %p78 = por %p76, %p77
    %p79 = scmp.ne.s32.totalorder %s70, %s71
    %p80 = scmp.eq.s32.totalorder %s18, 0
    %p81 = por %p79, %p80
    %p82 = scmp.ne.s32.totalorder %s70, %s71
    %p83 = scmp.eq.s32.totalorder %s19, 1
    %p84 = por %p82, %p83
    %p86 = scmp.ne.s32.totalorder %s71, %s85
    %p87 = scmp.eq.s32.totalorder %s19, 0
    %p88 = por %p86, %p87
    %s90 = sadd.s32 %s89, 1
    %p93 = scmp.eq.s32.totalorder %s13, 1
    %p94 = scmp.ne.s32.totalorder %s89, %s91
    %p95 = scmp.eq.s32.totalorder %s13, 0
    %p96 = por %p94, %p95
    %p97 = scmp.ne.s32.totalorder %s89, %s91
    %p98 = scmp.eq.s32.totalorder %s18, 1
    %p99 = por %p97, %p98
    %p100 = scmp.ne.s32.totalorder %s91, %s92
    %p101 = scmp.eq.s32.totalorder %s18, 0
    %p102 = por %p100, %p101
    %p103 = scmp.ne.s32.totalorder %s91, %s92
    %p104 = scmp.eq.s32.totalorder %s19, 1
    %p105 = por %p103, %p104
    %p107 = scmp.ne.s32.totalorder %s92, %s106
    %p108 = scmp.eq.s32.totalorder %s19, 0
    %p109 = por %p107, %p108
    %s110 = ssub.s32 %s13, %s20
    %p111 = scmp.eq.s32.totalorder %s110, 0
    %s113 = sadd.s32 %s112, 1
    %s114 = scalar_select %p111, %s112, %s113
    %p117 = pneg %p111
    %p118 = scmp.eq.s32.totalorder %s13, 1
    %p119 = por %p117, %p118
    %p120 = scmp.ne.s32.totalorder %s112, %s115
    %p121 = scmp.eq.s32.totalorder %s13, 0
    %p122 = por %p120, %p121
    %p123 = scmp.ne.s32.totalorder %s112, %s115
    %p124 = scmp.eq.s32.totalorder %s18, 1
    %p125 = por %p123, %p124
    %p126 = scmp.ne.s32.totalorder %s115, %s116
    %p127 = scmp.eq.s32.totalorder %s18, 0
    %p128 = por %p126, %p127
    %p129 = scmp.ne.s32.totalorder %s115, %s116
    %p130 = scmp.eq.s32.totalorder %s19, 1
    %p131 = por %p129, %p130
    %p133 = scmp.ne.s32.totalorder %s116, %s132
    %p134 = scmp.eq.s32.totalorder %s19, 0
    %p135 = por %p133, %p134
    %s136 = ssub.s32 %s13, %s20
    %p137 = scmp.eq.s32.totalorder %s136, 0
    %s139 = sadd.s32 %s138, 1
    %s140 = scalar_select %p137, %s138, %s139
    %p143 = pneg %p137
    %p144 = scmp.eq.s32.totalorder %s13, 1
    %p145 = por %p143, %p144
    %p146 = scmp.ne.s32.totalorder %s138, %s141
    %p147 = scmp.eq.s32.totalorder %s13, 0
    %p148 = por %p146, %p147
    %p149 = scmp.ne.s32.totalorder %s138, %s141
    %p150 = scmp.eq.s32.totalorder %s18, 1
    %p151 = por %p149, %p150
    %p152 = scmp.ne.s32.totalorder %s141, %s142
    %p153 = scmp.eq.s32.totalorder %s18, 0
    %p154 = por %p152, %p153
    %p155 = scmp.ne.s32.totalorder %s141, %s142
    %p156 = scmp.eq.s32.totalorder %s19, 1
    %p157 = por %p155, %p156
    %p159 = scmp.ne.s32.totalorder %s142, %s158
    %p160 = scmp.eq.s32.totalorder %s19, 0
    %p161 = por %p159, %p160
    %s162 = ssub.s32 %s13, %s20
    %p163 = scmp.eq.s32.totalorder %s162, 0
    %s165 = sadd.s32 %s164, 1
    %s166 = scalar_select %p163, %s164, %s165
    %p169 = pneg %p163
    %p170 = scmp.eq.s32.totalorder %s13, 1
    %p171 = por %p169, %p170
    %p172 = scmp.ne.s32.totalorder %s164, %s167
    %p173 = scmp.eq.s32.totalorder %s13, 0
    %p174 = por %p172, %p173
    %p175 = scmp.ne.s32.totalorder %s164, %s167
    %p176 = scmp.eq.s32.totalorder %s18, 1
    %p177 = por %p175, %p176
    %p178 = scmp.ne.s32.totalorder %s167, %s168
    %p179 = scmp.eq.s32.totalorder %s18, 0
    %p180 = por %p178, %p179
    %p181 = scmp.ne.s32.totalorder %s167, %s168
    %p182 = scmp.eq.s32.totalorder %s19, 1
    %p183 = por %p181, %p182
    %p185 = scmp.ne.s32.totalorder %s168, %s184
    %p186 = scmp.eq.s32.totalorder %s19, 0
    %p187 = por %p185, %p186
    %p188 = scmp.le.s32.totalorder 1, %s13
    %p189 = scmp.lt.s32.totalorder %s13, 3
    %p190 = pnand %p188, %p189
    %p191 = pneg %p190
    // Predicated region
    $region9: #{tpu_custom_call.1} parent=5 // pred_check
      _
    $region10: #{tpu_custom_call.1} parent=5 // pred_check_branch
      %193 = sbr.rel (%p190) target = $region12
    $region11: #{tpu_custom_call.1} parent=5 // pred_region
      %s194 = ssub.s32 %s13, 1
      // Predicated region
      $region13: #{tpu_custom_call.1} parent=11 // pred_check
        %p195 = pneg %p60
      $region14: #{tpu_custom_call.1} parent=11 // pred_check_branch
        %197 = sbr.rel (%p195) target = $region16
      $region15: #{tpu_custom_call.1} parent=11 // pred_region
        _
      $region16: #{tpu_custom_call.1} parent=11 // pred_fallthru
        _
      // Predicated region
      $region17: #{tpu_custom_call.1} parent=11 // pred_check
        %p198 = pneg %p81
      $region18: #{tpu_custom_call.1} parent=11 // pred_check_branch
        %200 = sbr.rel (%p198) target = $region20
      $region19: #{tpu_custom_call.1} parent=11 // pred_region
        _
      $region20: #{tpu_custom_call.1} parent=11 // pred_fallthru
        _
      // Predicated region
      $region21: #{tpu_custom_call.1} parent=11 // pred_check
        %p201 = pneg %p102
      $region22: #{tpu_custom_call.1} parent=11 // pred_check_branch
        %203 = sbr.rel (%p201) target = $region24
      $region23: #{tpu_custom_call.1} parent=11 // pred_region
        _
      $region24: #{tpu_custom_call.1} parent=11 // pred_fallthru
        _
    $region12: #{tpu_custom_call.1} parent=5 // pred_fallthru
      _
    %p204 = scmp.lt.s32.totalorder %s13, 2
    // Predicated region
    $region25: #{tpu_custom_call.1} parent=5 // pred_check
      %p205 = pneg %p204
    $region26: #{tpu_custom_call.1} parent=5 // pred_check_branch
      %207 = sbr.rel (%p205) target = $region28
    $region27: #{tpu_custom_call.1} parent=5 // pred_region
      // Predicated region
      $region29: #{tpu_custom_call.1} parent=27 // pred_check
        %p208 = pneg %p33
      $region30: #{tpu_custom_call.1} parent=27 // pred_check_branch
        %210 = sbr.rel (%p208) target = $region32
      $region31: #{tpu_custom_call.1} parent=27 // pred_region
        %s211 = smul.u32 16, %s13
        %p212 = scmp.lt.s32.totalorder %s211, 31
        %s213 = scalar_select %p212, %s211, 31
        %s214 = smul.addr %s213, 8
        %s215 = scalar_lea.vmem %s0, %s214
        %s216 = smul.u32 16, %s13
      $region32: #{tpu_custom_call.1} parent=27 // pred_fallthru
        _
    $region28: #{tpu_custom_call.1} parent=5 // pred_fallthru
      _
    %p217 = scmp.le.s32.totalorder 1, %s13
    %p218 = scmp.lt.s32.totalorder %s13, 3
    %p219 = pnand %p217, %p218
    %p220 = pneg %p219
    // Predicated region
    $region33: #{tpu_custom_call.1} parent=5 // pred_check
      _
    $region34: #{tpu_custom_call.1} parent=5 // pred_check_branch
      %222 = sbr.rel (%p219) target = $region36
    $region35: #{tpu_custom_call.1} parent=5 // pred_region
      %s223 = ssub.s32 %s13, 1
      %s224 = smul.u32 16, %s18
      %p225 = scmp.lt.s32.totalorder %s224, 31
      %s226 = scalar_select %p225, %s224, 31
      %s227 = smul.addr %s226, 8
      %s228 = scalar_lea.vmem %s0, %s227
      %p229 = pneg %p39
      %p230 = pneg %p36
      %p231 = pneg %p60
      %p232 = pneg %p57
      %p233 = pneg %p81
      %p234 = pneg %p78
      %p235 = pneg %p102
      %p236 = pneg %p99
      %p237 = pneg %p128
      %p238 = pneg %p125
      %s239 = smul.u32 16, %s18
      %p240 = scmp.lt.s32.totalorder %s239, 31
      %s241 = scalar_select %p240, %s239, 31
      %s242 = smul.addr %s241, 4
      %s243 = scalar_lea.vmem %s4, %s242
      %p244 = pneg %p154
      %p245 = pneg %p151
      %s246 = smul.u32 16, %s18
      %p247 = scmp.lt.s32.totalorder %s246, 31
      %s248 = scalar_select %p247, %s246, 31
      %s249 = smul.addr %s248, 8
      %s250 = scalar_lea.vmem %s5, %s249
      %p251 = pneg %p180
      %p252 = pneg %p177
      %s253 = smul.u32 16, %s18
      %p254 = scmp.lt.s32.totalorder %s253, 31
      %s255 = scalar_select %p254, %s253, 31
      %s256 = smul.addr %s255, 8
      %s257 = scalar_lea.vmem %s6, %s256
      %s258 = smul.u32 16, %s18
      %p259 = scmp.lt.s32.totalorder %s258, 31
      %s260 = scalar_select %p259, %s258, 31
      %s261 = smul.addr %s260, 8
      %s262 = scalar_lea.vmem %s0, %s261
      %s263 = smul.u32 16, %s18
      %s264 = smul.u32 16, %s18
      %p265 = scmp.lt.s32.totalorder %s264, 31
      %s266 = scalar_select %p265, %s264, 31
      %s267 = smul.addr %s266, 4
      %s268 = scalar_lea.vmem %s4, %s267
      %s269 = smul.u32 16, %s18
      %s270 = smul.u32 16, %s18
      %p271 = scmp.lt.s32.totalorder %s270, 31
      %s272 = scalar_select %p271, %s270, 31
      %s273 = smul.addr %s272, 8
      %s274 = scalar_lea.vmem %s5, %s273
      %s275 = smul.u32 16, %s18
      %s276 = smul.u32 16, %s18
      %p277 = scmp.lt.s32.totalorder %s276, 31
      %s278 = scalar_select %p277, %s276, 31
      %s279 = smul.addr %s278, 8
      %s280 = scalar_lea.vmem %s6, %s279
      %s281 = smul.u32 16, %s18
      %v282 = vld [vmem:[%s262] sm:$0xff]
      %v283 = vld [vmem:[%s262 + $0x8] sm:$0xff]
      %v284 = vld [vmem:[%s262 + $0x10] sm:$0xff]
      %v285 = vld [vmem:[%s262 + $0x18] sm:$0xff]
      %v286 = vld [vmem:[%s262 + $0x20] sm:$0xff]
      %v287 = vld [vmem:[%s262 + $0x28] sm:$0xff]
      %v288 = vld [vmem:[%s262 + $0x30] sm:$0xff]
      %v289 = vld [vmem:[%s262 + $0x38] sm:$0xff]
      %v290 = vld [vmem:[%s262 + $0x40] sm:$0xff]
      %v291 = vld [vmem:[%s262 + $0x48] sm:$0xff]
      %v292 = vld [vmem:[%s262 + $0x50] sm:$0xff]
      %v293 = vld [vmem:[%s262 + $0x58] sm:$0xff]
      %v294 = vld [vmem:[%s262 + $0x60] sm:$0xff]
      %v295 = vld [vmem:[%s262 + $0x68] sm:$0xff]
      %v296 = vld [vmem:[%s262 + $0x70] sm:$0xff]
      %v297 = vld [vmem:[%s262 + $0x78] sm:$0xff]
      %v298 = vld [vmem:[%s1] sm:$0xff]
      %v299 = vld [vmem:[%s1 + $0x8] sm:$0xff]
      %v300 = vld [vmem:[%s1 + $0x10] sm:$0xff]
      %v301 = vld [vmem:[%s1 + $0x18] sm:$0xff]
      %vm302 = vcmask 261120
      %v304 = vsel %vm302, %v282, 0
      %v307 = vsel %vm302, %v283, 0
      %v310 = vsel %vm302, %v284, 0
      %v313 = vsel %vm302, %v285, 0
      %v316 = vsel %vm302, %v286, 0
      %v319 = vsel %vm302, %v287, 0
      %v322 = vsel %vm302, %v288, 0
      %v325 = vsel %vm302, %v289, 0
      %v328 = vsel %vm302, %v290, 0
      %v331 = vsel %vm302, %v291, 0
      %v334 = vsel %vm302, %v292, 0
      %v337 = vsel %vm302, %v293, 0
      %v340 = vsel %vm302, %v294, 0
      %v343 = vsel %vm302, %v295, 0
      %v346 = vsel %vm302, %v296, 0
      %v349 = vsel %vm302, %v297, 0
      %351 = vmatprep.subr.mxu0 0.0
      %352 = vmatpush1.msra.mxu0 %v298
      %353 = vmatprep.subr.mxu0 0.0
      %354 = vmatpush1.msra.mxu0 %v299
      %355 = vmatprep.subr.mxu0 0.0
      %356 = vmatpush1.msra.mxu0 %v300
      %357 = vmatprep.subr.mxu0 0.0
      %358 = vmatpush1.msra.mxu0 %v301
      %359 = vmatprep.subr.mxu0 0.0
      %360 = vmatpush1.msra.mxu0 0.0
      %361 = vmatprep.subr.mxu0 0.0
      %362 = vmatpush1.msra.mxu0 0.0
      %363 = vmatprep.subr.mxu0 0.0
      %364 = vmatpush1.msra.mxu0 0.0
      %365 = vmatprep.subr.mxu0 0.0
      %366 = vmatpush1.msra.mxu0 0.0
      %367 = vmatprep.subr.mxu0 0.0
      %368 = vmatpush1.msra.mxu0 0.0
      %369 = vmatprep.subr.mxu0 0.0
      %370 = vmatpush1.msra.mxu0 0.0
      %371 = vmatprep.subr.mxu0 0.0
      %372 = vmatpush1.msra.mxu0 0.0
      %373 = vmatprep.subr.mxu0 0.0
      %374 = vmatpush1.msra.mxu0 0.0
      %375 = vmatprep.subr.mxu0 0.0
      %376 = vmatpush1.msra.mxu0 0.0
      %377 = vmatprep.subr.mxu0 0.0
      %378 = vmatpush1.msra.mxu0 0.0
      %379 = vmatprep.subr.mxu0 0.0
      %380 = vmatpush1.msra.mxu0 0.0
      %381 = vmatprep.subr.mxu0 0.0
      %382 = vmatpush1.msra.mxu0 0.0
      %383 = vmatprep.subr.mxu0 0.0
      %384 = vmatpush1.msra.mxu0 0.0
      %385 = vmatprep.subr.mxu0 0.0
      %386 = vmatpush1.msra.mxu0 0.0
      %387 = vmatprep.subr.mxu0 0.0
      %388 = vmatpush1.msra.mxu0 0.0
      %389 = vmatprep.subr.mxu0 0.0
      %390 = vmatpush1.msra.mxu0 0.0
      %391 = vmatprep.subr.mxu0 0.0
      %392 = vmatpush1.msra.mxu0 0.0
      %393 = vmatprep.subr.mxu0 0.0
      %394 = vmatpush1.msra.mxu0 0.0
      %395 = vmatprep.subr.mxu0 0.0
      %396 = vmatpush1.msra.mxu0 0.0
      %397 = vmatprep.subr.mxu0 0.0
      %398 = vmatpush1.msra.mxu0 0.0
      %399 = vmatprep.subr.mxu0 0.0
      %400 = vmatpush1.msra.mxu0 0.0
      %401 = vmatprep.subr.mxu0 0.0
      %402 = vmatpush1.msra.mxu0 0.0
      %403 = vmatprep.subr.mxu0 0.0
      %404 = vmatpush1.msra.mxu0 0.0
      %405 = vmatprep.subr.mxu0 0.0
      %406 = vmatpush1.msra.mxu0 0.0
      %407 = vmatprep.subr.mxu0 0.0
      %408 = vmatpush1.msra.mxu0 0.0
      %409 = vmatprep.subr.mxu0 0.0
      %410 = vmatpush1.msra.mxu0 0.0
      %411 = vmatprep.subr.mxu0 0.0
      %412 = vmatpush1.msra.mxu0 0.0
      %413 = vmatprep.subr.mxu0 0.0
      %414 = vmatpush1.msra.mxu0 0.0
      %415 = vmatprep.mubr.f32.mxu0 0.0
      %416 = vmatmul.mubr.f32.gmra.mrb[0].mxu0 %v304
      %v417 = vpop.f32.mrb[0].mxu0
      %v418 = vadd.f32 0.0, %v417
      %v419 = vpop.f32.mrb[0].mxu0
      %420 = vmatprep.mubr.f32.mxu0 0.0
      %421 = vmatmul.mubr.f32.gmra.mrb[0].mxu0 %v307
      %v422 = vpop.f32.mrb[0].mxu0
      %v423 = vadd.f32 0.0, %v422
      %v424 = vpop.f32.mrb[0].mxu0
      %425 = vmatprep.mubr.f32.mxu0 0.0
      %426 = vmatmul.mubr.f32.gmra.mrb[0].mxu0 %v310
      %v427 = vpop.f32.mrb[0].mxu0
      %v428 = vadd.f32 0.0, %v427
      %v429 = vpop.f32.mrb[0].mxu0
      %430 = vmatprep.mubr.f32.mxu0 0.0
      %431 = vmatmul.mubr.f32.gmra.mrb[0].mxu0 %v313
      %v432 = vpop.f32.mrb[0].mxu0
      %v433 = vadd.f32 0.0, %v432
      %v434 = vpop.f32.mrb[0].mxu0
      %435 = vmatprep.mubr.f32.mxu0 0.0
      %436 = vmatmul.mubr.f32.gmra.mrb[0].mxu0 %v316
      %v437 = vpop.f32.mrb[0].mxu0
      %v438 = vadd.f32 0.0, %v437
      %v439 = vpop.f32.mrb[0].mxu0
      %440 = vmatprep.mubr.f32.mxu0 0.0
      %441 = vmatmul.mubr.f32.gmra.mrb[0].mxu0 %v319
      %v442 = vpop.f32.mrb[0].mxu0
      %v443 = vadd.f32 0.0, %v442
      %v444 = vpop.f32.mrb[0].mxu0
      %445 = vmatprep.mubr.f32.mxu0 0.0
      %446 = vmatmul.mubr.f32.gmra.mrb[0].mxu0 %v322
      %v447 = vpop.f32.mrb[0].mxu0
      %v448 = vadd.f32 0.0, %v447
      %v449 = vpop.f32.mrb[0].mxu0
      %450 = vmatprep.mubr.f32.mxu0 0.0
      %451 = vmatmul.mubr.f32.gmra.mrb[0].mxu0 %v325
      %v452 = vpop.f32.mrb[0].mxu0
      %v453 = vadd.f32 0.0, %v452
      %v454 = vpop.f32.mrb[0].mxu0
      %455 = vmatprep.mubr.f32.mxu0 0.0
      %456 = vmatmul.mubr.f32.gmra.mrb[0].mxu0 %v328
      %v457 = vpop.f32.mrb[0].mxu0
      %v458 = vadd.f32 0.0, %v457
      %v459 = vpop.f32.mrb[0].mxu0
      %460 = vmatprep.mubr.f32.mxu0 0.0
      %461 = vmatmul.mubr.f32.gmra.mrb[0].mxu0 %v331
      %v462 = vpop.f32.mrb[0].mxu0
      %v463 = vadd.f32 0.0, %v462
      %v464 = vpop.f32.mrb[0].mxu0
      %465 = vmatprep.mubr.f32.mxu0 0.0
      %466 = vmatmul.mubr.f32.gmra.mrb[0].mxu0 %v334
      %v467 = vpop.f32.mrb[0].mxu0
      %v468 = vadd.f32 0.0, %v467
      %v469 = vpop.f32.mrb[0].mxu0
      %470 = vmatprep.mubr.f32.mxu0 0.0
      %471 = vmatmul.mubr.f32.gmra.mrb[0].mxu0 %v337
      %v472 = vpop.f32.mrb[0].mxu0
      %v473 = vadd.f32 0.0, %v472
      %v474 = vpop.f32.mrb[0].mxu0
      %475 = vmatprep.mubr.f32.mxu0 0.0
      %476 = vmatmul.mubr.f32.gmra.mrb[0].mxu0 %v340
      %v477 = vpop.f32.mrb[0].mxu0
      %v478 = vadd.f32 0.0, %v477
      %v479 = vpop.f32.mrb[0].mxu0
      %480 = vmatprep.mubr.f32.mxu0 0.0
      %481 = vmatmul.mubr.f32.gmra.mrb[0].mxu0 %v343
      %v482 = vpop.f32.mrb[0].mxu0
      %v483 = vadd.f32 0.0, %v482
      %v484 = vpop.f32.mrb[0].mxu0
      %485 = vmatprep.mubr.f32.mxu0 0.0
      %486 = vmatmul.mubr.f32.gmra.mrb[0].mxu0 %v346
      %v487 = vpop.f32.mrb[0].mxu0
      %v488 = vadd.f32 0.0, %v487
      %v489 = vpop.f32.mrb[0].mxu0
      %490 = vmatprep.mubr.f32.mxu0 0.0
      %491 = vmatmul.mubr.f32.gmra.mrb[0].mxu0 %v349
      %v492 = vpop.f32.mrb[0].mxu0
      %v493 = vadd.f32 0.0, %v492
      %v494 = vpop.f32.mrb[0].mxu0
      %495 = vdwg.mxu0
      %v496 = vpack.c.bf16 %v423, %v418
      %v497 = vpack.c.bf16 %v433, %v428
      %v498 = vpack.c.bf16 %v443, %v438
      %v499 = vpack.c.bf16 %v453, %v448
      %v500 = vpack.c.bf16 %v463, %v458
      %v501 = vpack.c.bf16 %v473, %v468
      %v502 = vpack.c.bf16 %v483, %v478
      %v503 = vpack.c.bf16 %v493, %v488
      %v512 = vunpack.c.l.b16 %v496
      %v513 = vunpack.c.h.b16 %v496
      %v514 = vunpack.c.l.b16 %v497
      %v515 = vunpack.c.h.b16 %v497
      %v516 = vunpack.c.l.b16 %v498
      %v517 = vunpack.c.h.b16 %v498
      %v518 = vunpack.c.l.b16 %v499
      %v519 = vunpack.c.h.b16 %v499
      %v520 = vunpack.c.l.b16 %v500
      %v521 = vunpack.c.h.b16 %v500
      %v522 = vunpack.c.l.b16 %v501
      %v523 = vunpack.c.h.b16 %v501
      %v524 = vunpack.c.l.b16 %v502
      %v525 = vunpack.c.h.b16 %v502
      %v526 = vunpack.c.l.b16 %v503
      %v527 = vunpack.c.h.b16 %v503
      %v528 = vpack.c.b16 %v512, %v512
      %v529 = vpack.c.b16 %v513, %v513
      %v530 = vpack.c.b16 %v514, %v514
      %v531 = vpack.c.b16 %v515, %v515
      %v532 = vpack.c.b16 %v516, %v516
      %v533 = vpack.c.b16 %v517, %v517
      %v534 = vpack.c.b16 %v518, %v518
      %v535 = vpack.c.b16 %v519, %v519
      %v536 = vpack.c.b16 %v520, %v520
      %v537 = vpack.c.b16 %v521, %v521
      %v538 = vpack.c.b16 %v522, %v522
      %v539 = vpack.c.b16 %v523, %v523
      %v540 = vpack.c.b16 %v524, %v524
      %v541 = vpack.c.b16 %v525, %v525
      %v542 = vpack.c.b16 %v526, %v526
      %v543 = vpack.c.b16 %v527, %v527
      %vm560 = vcmask 519168
      %561 = vst.msk [vmem:[%s268] sm:$0xf] %vm560, %v528
      %562 = vst.msk [vmem:[%s268 + $0x4] sm:$0xf] %vm560, %v529
      %563 = vst.msk [vmem:[%s268 + $0x8] sm:$0xf] %vm560, %v530
      %564 = vst.msk [vmem:[%s268 + $0xc] sm:$0xf] %vm560, %v531
      %565 = vst.msk [vmem:[%s268 + $0x10] sm:$0xf] %vm560, %v532
      %566 = vst.msk [vmem:[%s268 + $0x14] sm:$0xf] %vm560, %v533
      %567 = vst.msk [vmem:[%s268 + $0x18] sm:$0xf] %vm560, %v534
      %568 = vst.msk [vmem:[%s268 + $0x1c] sm:$0xf] %vm560, %v535
      %569 = vst.msk [vmem:[%s268 + $0x20] sm:$0xf] %vm560, %v536
      %570 = vst.msk [vmem:[%s268 + $0x24] sm:$0xf] %vm560, %v537
      %571 = vst.msk [vmem:[%s268 + $0x28] sm:$0xf] %vm560, %v538
      %572 = vst.msk [vmem:[%s268 + $0x2c] sm:$0xf] %vm560, %v539
      %573 = vst.msk [vmem:[%s268 + $0x30] sm:$0xf] %vm560, %v540
      %574 = vst.msk [vmem:[%s268 + $0x34] sm:$0xf] %vm560, %v541
      %575 = vst.msk [vmem:[%s268 + $0x38] sm:$0xf] %vm560, %v542
      %576 = vst.msk [vmem:[%s268 + $0x3c] sm:$0xf] %vm560, %v543
      %v577 = vld [vmem:[%s2] sm:$0x1]
      %v579 = vlaneseq
      %v580 = vshrl.u32 %v579, 7
      %v581 = vsub.s32 0, %v580
      %v582 = vrot.slane %v577, %v581
      %v584 = vmul.f32 %v418, %v582
      %v585 = vmul.f32 %v423, %v582
      %v586 = vmul.f32 %v428, %v582
      %v587 = vmul.f32 %v433, %v582
      %v588 = vmul.f32 %v438, %v582
      %v589 = vmul.f32 %v443, %v582
      %v590 = vmul.f32 %v448, %v582
      %v591 = vmul.f32 %v453, %v582
      %v592 = vmul.f32 %v458, %v582
      %v593 = vmul.f32 %v463, %v582
      %v594 = vmul.f32 %v468, %v582
      %v595 = vmul.f32 %v473, %v582
      %v596 = vmul.f32 %v478, %v582
      %v597 = vmul.f32 %v483, %v582
      %v598 = vmul.f32 %v488, %v582
      %v599 = vmul.f32 %v493, %v582
      %vm600 = vcmask 523264
      %v601 = vsel %vm600, %v584, 0.0
      %602 = vadd.xlane.f32.xlu0 %v601
      %v603 = vpop.xlane.xlu0 %602
      %v604 = vsel %vm600, %v585, 0.0
      %605 = vadd.xlane.f32.xlu0 %v604
      %v606 = vpop.xlane.xlu0 %605
      %v607 = vsel %vm600, %v586, 0.0
      %608 = vadd.xlane.f32.xlu0 %v607
      %v609 = vpop.xlane.xlu0 %608
      %v610 = vsel %vm600, %v587, 0.0
      %611 = vadd.xlane.f32.xlu0 %v610
      %v612 = vpop.xlane.xlu0 %611
      %v613 = vsel %vm600, %v588, 0.0
      %614 = vadd.xlane.f32.xlu0 %v613
      %v615 = vpop.xlane.xlu0 %614
      %v616 = vsel %vm600, %v589, 0.0
      %617 = vadd.xlane.f32.xlu0 %v616
      %v618 = vpop.xlane.xlu0 %617
      %v619 = vsel %vm600, %v590, 0.0
      %620 = vadd.xlane.f32.xlu0 %v619
      %v621 = vpop.xlane.xlu0 %620
      %v622 = vsel %vm600, %v591, 0.0
      %623 = vadd.xlane.f32.xlu0 %v622
      %v624 = vpop.xlane.xlu0 %623
      %v625 = vsel %vm600, %v592, 0.0
      %626 = vadd.xlane.f32.xlu0 %v625
      %v627 = vpop.xlane.xlu0 %626
      %v628 = vsel %vm600, %v593, 0.0
      %629 = vadd.xlane.f32.xlu0 %v628
      %v630 = vpop.xlane.xlu0 %629
      %v631 = vsel %vm600, %v594, 0.0
      %632 = vadd.xlane.f32.xlu0 %v631
      %v633 = vpop.xlane.xlu0 %632
      %v634 = vsel %vm600, %v595, 0.0
      %635 = vadd.xlane.f32.xlu0 %v634
      %v636 = vpop.xlane.xlu0 %635
      %v637 = vsel %vm600, %v596, 0.0
      %638 = vadd.xlane.f32.xlu0 %v637
      %v639 = vpop.xlane.xlu0 %638
      %v640 = vsel %vm600, %v597, 0.0
      %641 = vadd.xlane.f32.xlu0 %v640
      %v642 = vpop.xlane.xlu0 %641
      %v643 = vsel %vm600, %v598, 0.0
      %644 = vadd.xlane.f32.xlu0 %v643
      %v645 = vpop.xlane.xlu0 %644
      %v646 = vsel %vm600, %v599, 0.0
      %647 = vadd.xlane.f32.xlu0 %v646
      %v648 = vpop.xlane.xlu0 %647
      %vm649 = vcmask 7168
      %650 = vst.msk [vmem:[%s274] sm:$0xff] %vm649, %v603
      %651 = vst.msk [vmem:[%s274 + $0x8] sm:$0xff] %vm649, %v606
      %652 = vst.msk [vmem:[%s274 + $0x10] sm:$0xff] %vm649, %v609
      %653 = vst.msk [vmem:[%s274 + $0x18] sm:$0xff] %vm649, %v612
      %654 = vst.msk [vmem:[%s274 + $0x20] sm:$0xff] %vm649, %v615
      %655 = vst.msk [vmem:[%s274 + $0x28] sm:$0xff] %vm649, %v618
      %656 = vst.msk [vmem:[%s274 + $0x30] sm:$0xff] %vm649, %v621
      %657 = vst.msk [vmem:[%s274 + $0x38] sm:$0xff] %vm649, %v624
      %658 = vst.msk [vmem:[%s274 + $0x40] sm:$0xff] %vm649, %v627
      %659 = vst.msk [vmem:[%s274 + $0x48] sm:$0xff] %vm649, %v630
      %660 = vst.msk [vmem:[%s274 + $0x50] sm:$0xff] %vm649, %v633
      %661 = vst.msk [vmem:[%s274 + $0x58] sm:$0xff] %vm649, %v636
      %662 = vst.msk [vmem:[%s274 + $0x60] sm:$0xff] %vm649, %v639
      %663 = vst.msk [vmem:[%s274 + $0x68] sm:$0xff] %vm649, %v642
      %664 = vst.msk [vmem:[%s274 + $0x70] sm:$0xff] %vm649, %v645
      %665 = vst.msk [vmem:[%s274 + $0x78] sm:$0xff] %vm649, %v648
      %v666 = vld [vmem:[%s3] sm:$0x1]
      %v668 = vlaneseq
      %v669 = vshrl.u32 %v668, 7
      %v670 = vsub.s32 0, %v669
      %v671 = vrot.slane %v666, %v670
      %v673 = vmul.f32 %v418, %v671
      %v674 = vmul.f32 %v423, %v671
      %v675 = vmul.f32 %v428, %v671
      %v676 = vmul.f32 %v433, %v671
      %v677 = vmul.f32 %v438, %v671
      %v678 = vmul.f32 %v443, %v671
      %v679 = vmul.f32 %v448, %v671
      %v680 = vmul.f32 %v453, %v671
      %v681 = vmul.f32 %v458, %v671
      %v682 = vmul.f32 %v463, %v671
      %v683 = vmul.f32 %v468, %v671
      %v684 = vmul.f32 %v473, %v671
      %v685 = vmul.f32 %v478, %v671
      %v686 = vmul.f32 %v483, %v671
      %v687 = vmul.f32 %v488, %v671
      %v688 = vmul.f32 %v493, %v671
      %v689 = vsel %vm600, %v673, 0.0
      %690 = vadd.xlane.f32.xlu0 %v689
      %v691 = vpop.xlane.xlu0 %690
      %v692 = vsel %vm600, %v674, 0.0
      %693 = vadd.xlane.f32.xlu0 %v692
      %v694 = vpop.xlane.xlu0 %693
      %v695 = vsel %vm600, %v675, 0.0
      %696 = vadd.xlane.f32.xlu0 %v695
      %v697 = vpop.xlane.xlu0 %696
      %v698 = vsel %vm600, %v676, 0.0
      %699 = vadd.xlane.f32.xlu0 %v698
      %v700 = vpop.xlane.xlu0 %699
      %v701 = vsel %vm600, %v677, 0.0
      %702 = vadd.xlane.f32.xlu0 %v701
      %v703 = vpop.xlane.xlu0 %702
      %v704 = vsel %vm600, %v678, 0.0
      %705 = vadd.xlane.f32.xlu0 %v704
      %v706 = vpop.xlane.xlu0 %705
      %v707 = vsel %vm600, %v679, 0.0
      %708 = vadd.xlane.f32.xlu0 %v707
      %v709 = vpop.xlane.xlu0 %708
      %v710 = vsel %vm600, %v680, 0.0
      %711 = vadd.xlane.f32.xlu0 %v710
      %v712 = vpop.xlane.xlu0 %711
      %v713 = vsel %vm600, %v681, 0.0
      %714 = vadd.xlane.f32.xlu0 %v713
      %v715 = vpop.xlane.xlu0 %714
      %v716 = vsel %vm600, %v682, 0.0
      %717 = vadd.xlane.f32.xlu0 %v716
      %v718 = vpop.xlane.xlu0 %717
      %v719 = vsel %vm600, %v683, 0.0
      %720 = vadd.xlane.f32.xlu0 %v719
      %v721 = vpop.xlane.xlu0 %720
      %v722 = vsel %vm600, %v684, 0.0
      %723 = vadd.xlane.f32.xlu0 %v722
      %v724 = vpop.xlane.xlu0 %723
      %v725 = vsel %vm600, %v685, 0.0
      %726 = vadd.xlane.f32.xlu0 %v725
      %v727 = vpop.xlane.xlu0 %726
      %v728 = vsel %vm600, %v686, 0.0
      %729 = vadd.xlane.f32.xlu0 %v728
      %v730 = vpop.xlane.xlu0 %729
      %v731 = vsel %vm600, %v687, 0.0
      %732 = vadd.xlane.f32.xlu0 %v731
      %v733 = vpop.xlane.xlu0 %732
      %v734 = vsel %vm600, %v688, 0.0
      %735 = vadd.xlane.f32.xlu0 %v734
      %v736 = vpop.xlane.xlu0 %735
      %737 = vst.msk [vmem:[%s280] sm:$0xff] %vm649, %v691
      %738 = vst.msk [vmem:[%s280 + $0x8] sm:$0xff] %vm649, %v694
      %739 = vst.msk [vmem:[%s280 + $0x10] sm:$0xff] %vm649, %v697
      %740 = vst.msk [vmem:[%s280 + $0x18] sm:$0xff] %vm649, %v700
      %741 = vst.msk [vmem:[%s280 + $0x20] sm:$0xff] %vm649, %v703
      %742 = vst.msk [vmem:[%s280 + $0x28] sm:$0xff] %vm649, %v706
      %743 = vst.msk [vmem:[%s280 + $0x30] sm:$0xff] %vm649, %v709
      %744 = vst.msk [vmem:[%s280 + $0x38] sm:$0xff] %vm649, %v712
      %745 = vst.msk [vmem:[%s280 + $0x40] sm:$0xff] %vm649, %v715
      %746 = vst.msk [vmem:[%s280 + $0x48] sm:$0xff] %vm649, %v718
      %747 = vst.msk [vmem:[%s280 + $0x50] sm:$0xff] %vm649, %v721
      %748 = vst.msk [vmem:[%s280 + $0x58] sm:$0xff] %vm649, %v724
      %749 = vst.msk [vmem:[%s280 + $0x60] sm:$0xff] %vm649, %v727
      %750 = vst.msk [vmem:[%s280 + $0x68] sm:$0xff] %vm649, %v730
      %751 = vst.msk [vmem:[%s280 + $0x70] sm:$0xff] %vm649, %v733
      %752 = vst.msk [vmem:[%s280 + $0x78] sm:$0xff] %vm649, %v736
      %s753 = smul.u32 16, %s18
      %p754 = scmp.lt.s32.totalorder %s753, 31
      %s755 = scalar_select %p754, %s753, 31
      %s756 = smul.addr %s755, 4
      %s757 = scalar_lea.vmem %s4, %s756
      %s758 = smul.u32 16, %s18
      %p759 = scmp.lt.s32.totalorder %s758, 31
      %s760 = scalar_select %p759, %s758, 31
      %s761 = smul.addr %s760, 8
      %s762 = scalar_lea.vmem %s5, %s761
      %s763 = smul.u32 16, %s18
      %p764 = scmp.lt.s32.totalorder %s763, 31
      %s765 = scalar_select %p764, %s763, 31
      %s766 = smul.addr %s765, 8
      %s767 = scalar_lea.vmem %s6, %s766
      // Predicated region
      $region37: #{tpu_custom_call.1} parent=35 // pred_check
        %p768 = pneg %p125
      $region38: #{tpu_custom_call.1} parent=35 // pred_check_branch
        %770 = sbr.rel (%p768) target = $region40
      $region39: #{tpu_custom_call.1} parent=35 // pred_region
        %s771 = smul.u32 16, %s18
      $region40: #{tpu_custom_call.1} parent=35 // pred_fallthru
        _
      // Predicated region
      $region41: #{tpu_custom_call.1} parent=35 // pred_check
        %p772 = pneg %p151
      $region42: #{tpu_custom_call.1} parent=35 // pred_check_branch
        %774 = sbr.rel (%p772) target = $region44
      $region43: #{tpu_custom_call.1} parent=35 // pred_region
        %s775 = smul.u32 16, %s18
      $region44: #{tpu_custom_call.1} parent=35 // pred_fallthru
        _
      // Predicated region
      $region45: #{tpu_custom_call.1} parent=35 // pred_check
        %p776 = pneg %p177
      $region46: #{tpu_custom_call.1} parent=35 // pred_check_branch
        %778 = sbr.rel (%p776) target = $region48
      $region47: #{tpu_custom_call.1} parent=35 // pred_region
        %s779 = smul.u32 16, %s18
      $region48: #{tpu_custom_call.1} parent=35 // pred_fallthru
        _
    $region36: #{tpu_custom_call.1} parent=5 // pred_fallthru
      _
    %p780 = scmp.le.s32.totalorder 2, %s13
    // Predicated region
    $region49: #{tpu_custom_call.1} parent=5 // pred_check
      %p781 = pneg %p780
    $region50: #{tpu_custom_call.1} parent=5 // pred_check_branch
      %783 = sbr.rel (%p781) target = $region52
    $region51: #{tpu_custom_call.1} parent=5 // pred_region
      %s784 = ssub.s32 %s13, 2
      // Predicated region
      $region53: #{tpu_custom_call.1} parent=51 // pred_check
        %p785 = pneg %p131
      $region54: #{tpu_custom_call.1} parent=51 // pred_check_branch
        %787 = sbr.rel (%p785) target = $region56
      $region55: #{tpu_custom_call.1} parent=51 // pred_region
        %s788 = smul.u32 16, %s19
        %p789 = scmp.lt.s32.totalorder %s788, 31
        %s790 = scalar_select %p789, %s788, 31
        %s791 = smul.addr %s790, 4
        %s792 = scalar_lea.vmem %s4, %s791
      $region56: #{tpu_custom_call.1} parent=51 // pred_fallthru
        _
      // Predicated region
      $region57: #{tpu_custom_call.1} parent=51 // pred_check
        %p793 = pneg %p157
      $region58: #{tpu_custom_call.1} parent=51 // pred_check_branch
        %795 = sbr.rel (%p793) target = $region60
      $region59: #{tpu_custom_call.1} parent=51 // pred_region
        %s796 = smul.u32 16, %s19
        %p797 = scmp.lt.s32.totalorder %s796, 31
        %s798 = scalar_select %p797, %s796, 31
        %s799 = smul.addr %s798, 8
        %s800 = scalar_lea.vmem %s5, %s799
      $region60: #{tpu_custom_call.1} parent=51 // pred_fallthru
        _
      // Predicated region
      $region61: #{tpu_custom_call.1} parent=51 // pred_check
        %p801 = pneg %p183
      $region62: #{tpu_custom_call.1} parent=51 // pred_check_branch
        %803 = sbr.rel (%p801) target = $region64
      $region63: #{tpu_custom_call.1} parent=51 // pred_region
        %s804 = smul.u32 16, %s19
        %p805 = scmp.lt.s32.totalorder %s804, 31
        %s806 = scalar_select %p805, %s804, 31
        %s807 = smul.addr %s806, 8
        %s808 = scalar_lea.vmem %s6, %s807
      $region64: #{tpu_custom_call.1} parent=51 // pred_fallthru
        _
    $region52: #{tpu_custom_call.1} parent=5 // pred_fallthru
      _
  $region6: #{tpu_custom_call.1} parent=0 // loop_footer
    %s17 = sadd.s32 1, %s13
  $region7: #{tpu_custom_call.1} parent=0 // loop_footer_branch
    %12 = sbr.rel target = $region3
  $region8: #{tpu_custom_call.1} parent=0 // loop_exit
    _

</llo_original>
